<compile_context>
chip_gen: v7x
topology: tpu7x:2x2x1
jax: 0.10.0
libtpu: 0.0.40
codegen_flags: <defaults>
</compile_context>

<pallas_src>
import functools
import math

import jax
import jax.numpy as jnp
from jax.experimental import pallas as pl
from jax.experimental.pallas import tpu as pltpu


# ----------------------------------------------------------------------------
# Pallas kernels
# ----------------------------------------------------------------------------

def _apply_act(x, activation):
    if activation == "relu":
        return jnp.maximum(x, 0.0)
    if activation == "leaky_relu":
        return jnp.where(x > 0, x, 0.01 * x)
    if activation == "selu":
        alpha = 1.6732632423543772
        scale = 1.0507009873554805
        return scale * jnp.where(x > 0, x, alpha * (jnp.exp(x) - 1.0))
    return x


def _mm_kernel(a_ref, b_ref, bias_ref, o_ref, acc_ref, *, activation):
    k = pl.program_id(2)

    @pl.when(k == 0)
    def _():
        acc_ref[...] = jnp.zeros_like(acc_ref)

    acc_ref[...] += jnp.dot(a_ref[...], b_ref[...],
                            preferred_element_type=jnp.float32)

    @pl.when(k == pl.num_programs(2) - 1)
    def _():
        out = acc_ref[...] + bias_ref[...]          # (TM,TN) + (1,TN), fp32
        o_ref[...] = _apply_act(out, activation).astype(o_ref.dtype)


def _round_up(x, m):
    return (x + m - 1) // m * m


def _pick_tile(padded_dim, candidates=(512, 384, 256, 128)):
    for c in candidates:
        if padded_dim % c == 0:
            return c
    return 128


@functools.partial(jax.jit, static_argnames=("activation",))
def matmul_bias_act(a, b, bias, activation="none"):
    """out = act(a @ b + bias). a:(M,K) b:(K,N) bias:(N,). bf16 MXU, fp32 accumulate."""
    M, K = a.shape
    _, N = b.shape
    # Adaptive tiles: tiny-M matmuls (transformer: M = S*B = 18) get a full-extent
    # M block rounded to 8; big conv matmuls get 256-row, up-to-512-lane tiles.
    if M <= 256:
        TM = _round_up(M, 8)
        Mp = TM
    else:
        TM = 256
        Mp = _round_up(M, TM)
    Np = _round_up(N, 128)
    Kp = _round_up(K, 128)
    TN = _pick_tile(Np)
    TK = _pick_tile(Kp)

    a_p = jnp.pad(a.astype(jnp.bfloat16), ((0, Mp - M), (0, Kp - K)))
    b_p = jnp.pad(b.astype(jnp.bfloat16), ((0, Kp - K), (0, Np - N)))
    bias_p = jnp.pad(bias.astype(jnp.float32), (0, Np - N)).reshape(1, Np)

    kernel = functools.partial(_mm_kernel, activation=activation)
    out = pl.pallas_call(
        kernel,
        out_shape=jax.ShapeDtypeStruct((Mp, Np), jnp.float32),
        grid_spec=pltpu.PrefetchScalarGridSpec(
            num_scalar_prefetch=0,
            grid=(Mp // TM, Np // TN, Kp // TK),
            in_specs=[
                pl.BlockSpec((TM, TK), lambda i, j, k: (i, k)),
                pl.BlockSpec((TK, TN), lambda i, j, k: (k, j)),
                pl.BlockSpec((1, TN), lambda i, j, k: (0, j)),
            ],
            out_specs=pl.BlockSpec((TM, TN), lambda i, j, k: (i, j)),
            scratch_shapes=[pltpu.VMEM((TM, TN), jnp.float32)],
        ),
        compiler_params=pltpu.CompilerParams(
            dimension_semantics=("parallel", "parallel", "arbitrary")),
    )(a_p, b_p, bias_p)
    return out[:M, :N]


def _attn_kernel(q_ref, k_ref, v_ref, o_ref, *, scale):
    q = q_ref[...]                                   # (BH, S, hd) bf16
    k = k_ref[...]
    v = v_ref[...]
    s = jnp.einsum("bqd,bkd->bqk", q, k,
                   preferred_element_type=jnp.float32) * scale
    s = s - jnp.max(s, axis=-1, keepdims=True)
    p = jnp.exp(s)                                   # fp32 softmax math
    p = p * pl.reciprocal(jnp.sum(p, axis=-1, keepdims=True), approx=True)
    o = jnp.einsum("bqk,bkd->bqd", p.astype(v.dtype), v,
                   preferred_element_type=jnp.float32)
    o_ref[...] = o.astype(o_ref.dtype)


@jax.jit
def mh_attention(q, k, v):
    """softmax(q k^T / sqrt(hd)) v for all batched heads in one kernel launch."""
    BH, S, hd = q.shape
    Sk = k.shape[1]
    q = q.astype(jnp.bfloat16)
    k = k.astype(jnp.bfloat16)
    v = v.astype(jnp.bfloat16)
    kernel = functools.partial(_attn_kernel, scale=1.0 / math.sqrt(hd))
    return pl.pallas_call(
        kernel,
        out_shape=jax.ShapeDtypeStruct((BH, S, hd), jnp.float32),
        grid_spec=pltpu.PrefetchScalarGridSpec(
            num_scalar_prefetch=0,
            grid=(1,),
            in_specs=[
                pl.BlockSpec((BH, S, hd), lambda i: (0, 0, 0)),
                pl.BlockSpec((BH, Sk, hd), lambda i: (0, 0, 0)),
                pl.BlockSpec((BH, Sk, hd), lambda i: (0, 0, 0)),
            ],
            out_specs=pl.BlockSpec((BH, S, hd), lambda i: (0, 0, 0)),
        ),
        compiler_params=pltpu.CompilerParams(
            dimension_semantics=("arbitrary",)),
    )(q, k, v)


# ----------------------------------------------------------------------------
# Conv / pooling / resize glue (patch extraction stays in plain JAX; the matmul
# hot path runs in the Pallas kernel above).
# ----------------------------------------------------------------------------

def _extract_patches(x, kh, kw, stride, padding, dilation):
    """x: (N,H,W,C) -> patches (N,OH,OW,kh*kw*C), feature order (i, j, c)."""
    N, H, W, C = x.shape
    x = jnp.pad(x, ((0, 0), (padding, padding), (padding, padding), (0, 0)))
    Hp, Wp = H + 2 * padding, W + 2 * padding
    OH = (Hp - (dilation * (kh - 1) + 1)) // stride + 1
    OW = (Wp - (dilation * (kw - 1) + 1)) // stride + 1
    pieces = []
    for i in range(kh):
        for j in range(kw):
            sl = x[:,
                   i * dilation: i * dilation + (OH - 1) * stride + 1: stride,
                   j * dilation: j * dilation + (OW - 1) * stride + 1: stride,
                   :]
            pieces.append(sl)
    return jnp.concatenate(pieces, axis=-1), OH, OW


def conv2d(x, w, b=None, stride=1, padding=0, dilation=1, activation="none"):
    """x: NHWC, w: (Cout, Cin, kh, kw) [PyTorch layout], b: (Cout,) or None."""
    Cout, Cin, kh, kw = w.shape
    x = x.astype(jnp.bfloat16)                 # halve im2col HBM traffic
    patches, OH, OW = _extract_patches(x, kh, kw, stride, padding, dilation)
    Nb = x.shape[0]
    a = patches.reshape(Nb * OH * OW, kh * kw * Cin)
    wm = jnp.transpose(w, (2, 3, 1, 0)).reshape(kh * kw * Cin, Cout)
    bias = b if b is not None else jnp.zeros((Cout,), jnp.float32)
    out = matmul_bias_act(a, wm, bias, activation)
    return out.reshape(Nb, OH, OW, Cout)


def fold_bn(conv, bn, eps=1e-5):
    # eval-mode BatchNorm folded into conv weight/bias.
    s = bn["gamma"] / jnp.sqrt(bn["var"] + eps)
    w = conv["w"] * s[:, None, None, None]
    b0 = conv["b"] if conv["b"] is not None else 0.0
    b = (b0 - bn["mean"]) * s + bn["beta"]
    return w, b


def conv_bn_act(x, conv, bn, stride=1, padding=0, dilation=1, activation="none"):
    w, b = fold_bn(conv, bn)
    return conv2d(x, w, b, stride, padding, dilation, activation)


def maxpool2d_3x3_s2_p1(x):
    return jax.lax.reduce_window(
        x, -jnp.inf, jax.lax.max,
        window_dimensions=(1, 3, 3, 1),
        window_strides=(1, 2, 2, 1),
        padding=((0, 0), (1, 1), (1, 1), (0, 0)))


def upsample_bilinear_x2(x):
    """UpsamplingBilinear2d(scale_factor=2), align_corners=True, NHWC.
    2-tap gather + lerp (the interpolation matrix has 2 nonzeros per row)."""
    N, H, W, C = x.shape

    def idx_frac(n_in, n_out):
        if n_in == 1:
            return jnp.zeros((n_out,), jnp.int32), jnp.zeros((n_out,), jnp.float32)
        pos = jnp.arange(n_out, dtype=jnp.float32) * (n_in - 1) / (n_out - 1)
        lo = jnp.clip(jnp.floor(pos).astype(jnp.int32), 0, n_in - 2)
        frac = pos - lo.astype(jnp.float32)
        return lo, frac

    lo_h, fh = idx_frac(H, 2 * H)
    lo_w, fw = idx_frac(W, 2 * W)
    xh = (x[:, lo_h, :, :] * (1.0 - fh)[None, :, None, None]
          + x[:, lo_h + 1, :, :] * fh[None, :, None, None])
    out = (xh[:, :, lo_w, :] * (1.0 - fw)[None, None, :, None]
           + xh[:, :, lo_w + 1, :] * fw[None, None, :, None])
    return out


def layer_norm(x2d, p, eps=1e-5):
    mu = jnp.mean(x2d, axis=-1, keepdims=True)
    var = jnp.mean((x2d - mu) ** 2, axis=-1, keepdims=True)
    return (x2d - mu) / jnp.sqrt(var + eps) * p["g"] + p["b"]


# ----------------------------------------------------------------------------
# Deterministic parameter construction
# ----------------------------------------------------------------------------

class ParamGen:
    def __init__(self, seed=0):
        self.key = jax.random.PRNGKey(seed)

    def _next(self):
        self.key, sub = jax.random.split(self.key)
        return sub

    def normal(self, shape, scale):
        return scale * jax.random.normal(self._next(), shape, dtype=jnp.float32)


def conv_params(pg, cout, cin, kh, kw, bias=True):
    fan_in = cin * kh * kw
    w = pg.normal((cout, cin, kh, kw), math.sqrt(2.0 / fan_in))
    b = pg.normal((cout,), 0.01) if bias else None
    return {"w": w, "b": b}


def bn_params(pg, c):
    return {"gamma": 1.0 + pg.normal((c,), 0.05),
            "beta": pg.normal((c,), 0.05),
            "mean": jnp.zeros((c,), jnp.float32),
            "var": jnp.ones((c,), jnp.float32)}


def make_basic_block(pg, cin, cout, stride):
    p = {"stride": stride,
         "conv1": conv_params(pg, cout, cin, 3, 3, bias=False),
         "bn1": bn_params(pg, cout),
         "conv2": conv_params(pg, cout, cout, 3, 3, bias=False),
         "bn2": bn_params(pg, cout),
         "downsample": None}
    if stride != 1 or cin != cout:
        p["downsample"] = {"conv": conv_params(pg, cout, cin, 1, 1, bias=False),
                           "bn": bn_params(pg, cout)}
    return p


def make_resnet34(pg):
    cfg = [(64, 3, 1), (128, 4, 2), (256, 6, 2), (512, 3, 2)]
    params = {"conv1": conv_params(pg, 64, 3, 7, 7, bias=False),
              "bn1": bn_params(pg, 64), "layers": []}
    cin = 64
    for cout, n, stride in cfg:
        blocks = []
        for b in range(n):
            s = stride if b == 0 else 1
            blocks.append(make_basic_block(pg, cin, cout, s))
            cin = cout
        params["layers"].append(blocks)
    return params


def make_ln(pg, e):
    return {"g": 1.0 + pg.normal((e,), 0.02), "b": pg.normal((e,), 0.02)}


def make_mha(pg, e):
    return {"in_w": pg.normal((3 * e, e), 1.0 / math.sqrt(e)),
            "in_b": pg.normal((3 * e,), 0.01),
            "out_w": pg.normal((e, e), 1.0 / math.sqrt(e)),
            "out_b": pg.normal((e,), 0.01)}


def make_enc_layer(pg, e, f):
    return {"self_attn": make_mha(pg, e),
            "lin1_w": pg.normal((f, e), 1.0 / math.sqrt(e)),
            "lin1_b": pg.normal((f,), 0.01),
            "lin2_w": pg.normal((e, f), 1.0 / math.sqrt(f)),
            "lin2_b": pg.normal((e,), 0.01),
            "norm1": make_ln(pg, e), "norm2": make_ln(pg, e)}


def make_dec_layer(pg, e, f):
    d = make_enc_layer(pg, e, f)
    d["cross_attn"] = make_mha(pg, e)
    d["norm3"] = make_ln(pg, e)
    return d


def make_transformer(pg, e=512, nhead=8, nenc=6, ndec=6, f=2048):
    return {"nhead": nhead,
            "enc_layers": [make_enc_layer(pg, e, f) for _ in range(nenc)],
            "dec_layers": [make_dec_layer(pg, e, f) for _ in range(ndec)],
            "enc_norm": make_ln(pg, e),
            "dec_norm": make_ln(pg, e)}


def make_aspp(pg, cin, cout, rates):
    return {"convs": [conv_params(pg, cout, cin, 1, 1),
                      conv_params(pg, cout, cin, 3, 3),
                      conv_params(pg, cout, cin, 3, 3),
                      conv_params(pg, cout, cin, 3, 3),
                      conv_params(pg, cout, cin, 1, 1)],
            "rates": [None, rates[0], rates[1], rates[2], None],
            "cout": cout,
            "bn": bn_params(pg, cout * 5)}


def make_cau(pg, c):
    return {"conv1": conv_params(pg, c // 2, c, 3, 3),
            "bn1": bn_params(pg, c // 2),
            "conv2": conv_params(pg, c // 2, c // 2, 1, 1),
            "bn2": bn_params(pg, c // 2),
            "convT": {"w": pg.normal((c // 2, c // 2, 5, 5),
                                     math.sqrt(2.0 / (c // 2 * 25))),
                      "b": pg.normal((c // 2,), 0.01)}}


def make_classifier(pg, num_classes):
    return {"conv1": conv_params(pg, 32, 32, 1, 1), "bn1": bn_params(pg, 32),
            "conv2": conv_params(pg, num_classes, 32, 3, 3),
            "bn2": bn_params(pg, num_classes),
            "conv3": conv_params(pg, num_classes, num_classes, 1, 1),
            "bn3": bn_params(pg, num_classes)}


# ----------------------------------------------------------------------------
# Forward passes
# ----------------------------------------------------------------------------

def basic_block_fwd(x, p):
    out = conv_bn_act(x, p["conv1"], p["bn1"], stride=p["stride"], padding=1,
                      activation="relu")
    out = conv_bn_act(out, p["conv2"], p["bn2"], stride=1, padding=1)
    if p["downsample"] is not None:
        idn = conv_bn_act(x, p["downsample"]["conv"], p["downsample"]["bn"],
                          stride=p["stride"], padding=0)
    else:
        idn = x
    return jax.nn.relu(out + idn)


def resnet_fwd(x, p):
    x = conv_bn_act(x, p["conv1"], p["bn1"], stride=2, padding=3,
                    activation="relu")
    x = maxpool2d_3x3_s2_p1(x)
    for blocks in p["layers"]:
        for bp in blocks:
            x = basic_block_fwd(x, bp)
    return x                                          # (B, h, w, 512)


def mha_fwd(q_in, kv_in, p, nhead):
    S, B, E = q_in.shape
    Sk = kv_in.shape[0]
    hd = E // nhead
    if q_in is kv_in:
        # Self-attention: single fused QKV projection (1 launch, N = 3E lanes).
        qkv = matmul_bias_act(q_in.reshape(S * B, E), p["in_w"].T, p["in_b"])
        q, k, v = qkv[:, :E], qkv[:, E:2 * E], qkv[:, 2 * E:]
    else:
        # Cross-attention: Q from q_in, fused KV from kv_in (2 launches).
        q = matmul_bias_act(q_in.reshape(S * B, E), p["in_w"][:E].T, p["in_b"][:E])
        kv = matmul_bias_act(kv_in.reshape(Sk * B, E), p["in_w"][E:].T, p["in_b"][E:])
        k, v = kv[:, :E], kv[:, E:]
    q = q.reshape(S, B, nhead, hd).transpose(1, 2, 0, 3).reshape(B * nhead, S, hd)
    k = k.reshape(Sk, B, nhead, hd).transpose(1, 2, 0, 3).reshape(B * nhead, Sk, hd)
    v = v.reshape(Sk, B, nhead, hd).transpose(1, 2, 0, 3).reshape(B * nhead, Sk, hd)
    o = mh_attention(q, k, v)                         # Pallas attention kernel
    o = o.reshape(B, nhead, S, hd).transpose(2, 0, 1, 3).reshape(S * B, E)
    o = matmul_bias_act(o, p["out_w"].T, p["out_b"])
    return o.reshape(S, B, E)


def enc_layer_fwd(x, p, nhead):
    S, B, E = x.shape
    a = mha_fwd(x, x, p["self_attn"], nhead)
    x = layer_norm((x + a).reshape(S * B, E), p["norm1"])
    h = matmul_bias_act(x, p["lin1_w"].T, p["lin1_b"], activation="relu")
    h = matmul_bias_act(h, p["lin2_w"].T, p["lin2_b"])
    x = layer_norm(x + h, p["norm2"])
    return x.reshape(S, B, E)


def dec_layer_fwd(x, mem, p, nhead):
    S, B, E = x.shape
    a = mha_fwd(x, x, p["self_attn"], nhead)
    x = layer_norm((x + a).reshape(S * B, E), p["norm1"]).reshape(S, B, E)
    a = mha_fwd(x, mem, p["cross_attn"], nhead)
    x = layer_norm((x + a).reshape(S * B, E), p["norm2"])
    h = matmul_bias_act(x, p["lin1_w"].T, p["lin1_b"], activation="relu")
    h = matmul_bias_act(h, p["lin2_w"].T, p["lin2_b"])
    x = layer_norm(x + h, p["norm3"])
    return x.reshape(S, B, E)


def transformer_fwd(src, tgt, p):
    # TODO(synk): dropout layers are treated as identity (eval-mode semantics).
    nhead = p["nhead"]
    S, B, E = src.shape
    x = src
    for lp in p["enc_layers"]:
        x = enc_layer_fwd(x, lp, nhead)
    mem = layer_norm(x.reshape(S * B, E), p["enc_norm"]).reshape(S, B, E)
    y = tgt
    for lp in p["dec_layers"]:
        y = dec_layer_fwd(y, mem, lp, nhead)
    y = layer_norm(y.reshape(S * B, E), p["dec_norm"]).reshape(S, B, E)
    return y


def aspp_fwd(x, p):
    """ReLU(BN(concat(branches))) == concat(per-branch folded-BN + ReLU).
    When dilation >= feature extent, a dilated 3x3 branch reads only zero padding
    except at its center tap, so it degenerates (bit-exactly) to a 1x1 conv."""
    H, W = x.shape[1], x.shape[2]
    cout = p["cout"]
    branches = []
    for i, (conv, rate) in enumerate(zip(p["convs"], p["rates"])):
        bn_slice = {k: p["bn"][k][i * cout:(i + 1) * cout] for k in p["bn"]}
        w, b = fold_bn(conv, bn_slice)
        if rate is not None and rate >= H and rate >= W and w.shape[2] == 3:
            w = w[:, :, 1:2, 1:2]                     # center tap only
            rate = None
        branches.append((w, b, rate))
    if all(r is None and w.shape[2] == 1 and w.shape[3] == 1 for w, b, r in branches):
        # All branches are effectively 1x1 -> one fused lane-dense matmul (N = 5*cout).
        w_all = jnp.concatenate([w for w, _, _ in branches], axis=0)
        b_all = jnp.concatenate([b for _, b, _ in branches], axis=0)
        return conv2d(x, w_all, b_all, activation="relu")
    outs = []
    for w, b, rate in branches:
        if rate is None:
            outs.append(conv2d(x, w, b, activation="relu"))
        else:
            outs.append(conv2d(x, w, b, padding=rate, dilation=rate,
                               activation="relu"))
    return jnp.concatenate(outs, axis=-1)


def cau_fwd(x, p):
    x = conv_bn_act(x, p["conv1"], p["bn1"], activation="leaky_relu")
    x = conv_bn_act(x, p["conv2"], p["bn2"], activation="leaky_relu")
    x = upsample_bilinear_x2(x)
    # ConvTranspose2d(k=5, stride=1) == conv2d with padding=4 and flipped kernel.
    wt = p["convT"]["w"]                              # (Cin, Cout, 5, 5)
    w = jnp.transpose(wt, (1, 0, 2, 3))[:, :, ::-1, ::-1]
    x = conv2d(x, w, p["convT"]["b"], padding=4, activation="leaky_relu")
    return x


def upsample_fwd(x, p):
    x = conv_bn_act(x, p["conv0"], p["bn0"], activation="leaky_relu")
    for cau in p["caus"]:
        x = cau_fwd(x, cau)
    return x


def classifier_fwd(x, p):
    x = conv_bn_act(x, p["conv1"], p["bn1"], activation="selu")
    x = conv_bn_act(x, p["conv2"], p["bn2"], padding=1, activation="selu")
    x = conv_bn_act(x, p["conv3"], p["bn3"], activation="leaky_relu")
    return x


def segcdnet_fwd(t_nchw, params):
    x = jnp.transpose(t_nchw, (0, 2, 3, 1)).astype(jnp.float32)   # NCHW -> NHWC
    f = resnet_fwd(x, params["backbone"])                          # (B,h,w,512)
    B, h, w, C = f.shape
    t_i = jnp.transpose(f, (1, 2, 0, 3)).reshape(h * w, B, C)      # '(h w) b c'
    t_o = transformer_fwd(t_i, t_i, params["transformer"]) + t_i
    t_o = t_o.reshape(h, w, B, C).transpose(2, 0, 1, 3)            # back to (B,h,w,C)
    a_o = aspp_fwd(t_o, params["aspp"])
    u_o = upsample_fwd(a_o, params["upsample"])
    o = classifier_fwd(u_o, params["classifier"])
    return jnp.transpose(o, (0, 3, 1, 2))                          # NHWC -> NCHW


# ----------------------------------------------------------------------------
# Main
# ----------------------------------------------------------------------------

if __name__ == "__main__":
    pg = ParamGen(0)
    params = {
        "backbone": make_resnet34(pg),
        "transformer": make_transformer(pg),
        "aspp": make_aspp(pg, 512, 256, [6, 12, 18]),
        "upsample": {"conv0": conv_params(pg, 1024, 256 * 5, 1, 1),
                     "bn0": bn_params(pg, 1024),
                     "caus": [make_cau(pg, 2048 // 2 ** (i + 1)) for i in range(5)]},
        "classifier": make_classifier(pg, 7),
    }

    # Smallest input the module supports: backbone downsamples 32x and needs a
    # >=3x3 feature map for the no-padding 3x3 conv in ConvAndUpsample.
    key = jax.random.PRNGKey(0)
    t = jax.random.normal(key, (2, 3, 96, 96), dtype=jnp.float32)

    out = segcdnet_fwd(t, params)
    out = jax.block_until_ready(out)

    assert out.shape == (2, 7, 96, 96), out.shape
    assert bool(jnp.all(jnp.isfinite(out)))
    print("KERNEL_OK")
</pallas_src>

<mosaic_0001>
module attributes {stable_mosaic.version = 11 : i64} {
  func.func @_mm_kernel(%arg0: i32, %arg1: i32, %arg2: i32, %arg3: memref<256x256xbf16, #tpu.memory_space<vmem>>, %arg4: memref<256x128xbf16, #tpu.memory_space<vmem>>, %arg5: memref<1x128xf32, #tpu.memory_space<vmem>>, %arg6: memref<256x128xf32, #tpu.memory_space<vmem>>, %arg7: memref<256x128xf32, #tpu.memory_space<vmem>>) attributes {dimension_semantics = [#tpu.dimension_semantics<parallel>, #tpu.dimension_semantics<parallel>, #tpu.dimension_semantics<arbitrary>], iteration_bounds = array<i64: 18, 1, 1>, scalar_prefetch = 0 : i64, scratch_operands = 1 : i64, tpu.core_type = #tpu.core_type<tc>, window_params = [{transform_indices = @transform_0, window_bounds = array<i64: 256, 256>}, {transform_indices = @transform_1, window_bounds = array<i64: 256, 128>}, {transform_indices = @transform_2, window_bounds = array<i64: 1, 128>}, {transform_indices = @transform_3, window_bounds = array<i64: 256, 128>}]} {
    %c0_i32 = arith.constant 0 : i32
    %0 = arith.cmpi eq, %arg2, %c0_i32 : i32
    %1 = arith.extui %0 : i1 to i32
    %c0_i32_0 = arith.constant 0 : i32
    %2 = arith.cmpi ne, %1, %c0_i32_0 : i32
    scf.if %2 {
      %cst_10 = arith.constant 0.000000e+00 : f32
      %12 = vector.broadcast %cst_10 : f32 to vector<256x128xf32>
      %c0_11 = arith.constant 0 : index
      %c0_12 = arith.constant 0 : index
      %13 = vector.load %arg7[%c0_11, %c0_12] : memref<256x128xf32, #tpu.memory_space<vmem>>, vector<256x128xf32>
      tpu.vector_store %arg7[%c0_11, %c0_12], %12 {strides = array<i32>} : memref<256x128xf32, #tpu.memory_space<vmem>>, vector<256x128xf32>,
    } else {
    }
    %c0 = arith.constant 0 : index
    %c0_1 = arith.constant 0 : index
    %3 = vector.load %arg7[%c0, %c0_1] : memref<256x128xf32, #tpu.memory_space<vmem>>, vector<256x128xf32>
    %c0_2 = arith.constant 0 : index
    %c0_3 = arith.constant 0 : index
    %4 = vector.load %arg3[%c0_2, %c0_3] : memref<256x256xbf16, #tpu.memory_space<vmem>>, vector<256x256xbf16>
    %c0_4 = arith.constant 0 : index
    %c0_5 = arith.constant 0 : index
    %5 = vector.load %arg4[%c0_4, %c0_5] : memref<256x128xbf16, #tpu.memory_space<vmem>>, vector<256x128xbf16>
    %cst = arith.constant dense<0.000000e+00> : vector<256x128xf32>
    %6 = tpu.matmul %4, %5, %cst {dimension_numbers = #tpu.dot_dimension_numbers<[1], [0], [0], [1], [0, 0, 1, 1], [], []>} : vector<256x256xbf16>, vector<256x128xbf16>, vector<256x128xf32> -> vector<256x128xf32>
    %7 = arith.addf %3, %6 : vector<256x128xf32>
    %c0_6 = arith.constant 0 : index
    %c0_7 = arith.constant 0 : index
    %8 = vector.load %arg7[%c0_6, %c0_7] : memref<256x128xf32, #tpu.memory_space<vmem>>, vector<256x128xf32>
    tpu.vector_store %arg7[%c0_6, %c0_7], %7 {strides = array<i32>} : memref<256x128xf32, #tpu.memory_space<vmem>>, vector<256x128xf32>,
    %c0_i32_8 = arith.constant 0 : i32
    %9 = arith.cmpi eq, %arg2, %c0_i32_8 : i32
    %10 = arith.extui %9 : i1 to i32
    %c0_i32_9 = arith.constant 0 : i32
    %11 = arith.cmpi ne, %10, %c0_i32_9 : i32
    scf.if %11 {
      %c0_10 = arith.constant 0 : index
      %c0_11 = arith.constant 0 : index
      %12 = vector.load %arg7[%c0_10, %c0_11] : memref<256x128xf32, #tpu.memory_space<vmem>>, vector<256x128xf32>
      %c0_12 = arith.constant 0 : index
      %c0_13 = arith.constant 0 : index
      %13 = vector.load %arg5[%c0_12, %c0_13] : memref<1x128xf32, #tpu.memory_space<vmem>>, vector<1x128xf32>
      %14 = vector.broadcast %13 : vector<1x128xf32> to vector<256x128xf32>
      %15 = arith.addf %12, %14 : vector<256x128xf32>
      %cst_14 = arith.constant 0.000000e+00 : f32
      %16 = vector.broadcast %cst_14 : f32 to vector<256x128xf32>
      %17 = arith.maximumf %15, %16 : vector<256x128xf32>
      %c0_15 = arith.constant 0 : index
      %c0_16 = arith.constant 0 : index
      %18 = vector.load %arg6[%c0_15, %c0_16] : memref<256x128xf32, #tpu.memory_space<vmem>>, vector<256x128xf32>
      tpu.vector_store %arg6[%c0_15, %c0_16], %17 {strides = array<i32>} : memref<256x128xf32, #tpu.memory_space<vmem>>, vector<256x128xf32>,
    } else {
    }
    return
  }
  func.func @transform_0(%arg0: i32, %arg1: i32, %arg2: i32) -> (i32, i32) {
    %c0_i32 = arith.constant 0 : i32
    return %arg0, %arg2 : i32, i32
  }
  func.func @transform_1(%arg0: i32, %arg1: i32, %arg2: i32) -> (i32, i32) {
    %c0_i32 = arith.constant 0 : i32
    return %arg2, %arg1 : i32, i32
  }
  func.func @transform_2(%arg0: i32, %arg1: i32, %arg2: i32) -> (i32, i32) {
    %c0_i32 = arith.constant 0 : i32
    %c0_i32_0 = arith.constant 0 : i32
    return %c0_i32, %arg1 : i32, i32
  }
  func.func @transform_3(%arg0: i32, %arg1: i32, %arg2: i32) -> (i32, i32) {
    %c0_i32 = arith.constant 0 : i32
    return %arg0, %arg1 : i32, i32
  }
}

</mosaic_0001>

<llo_original>
// kernel: matmul_bias_act.1
$region0: #{matmul_bias_act.1}
  #allocation0 [shape = 'u32[]', space=smem, size = 0x4, offset = 0x4, fixed_abs, tag = 'smem constant byte address 0x4 - core index']
  #allocation1 [shape = 'u32[144,128]{1,0:T(1,128)}', space=vmem, size = 0x12000, scoped, tag = 'internal scratch']
  #allocation2 [shape = 'f32[256,128]{1,0:T(8,128)}', space=vmem, size = 0x20000, scoped, tag = 'scratch operand']
  %s0 = inlined_call_operand.vmem [shape: bf16[4608,256], index: 0, kind: input, shape index: {}]
  %s1 = inlined_call_operand.vmem [shape: bf16[256,128], index: 1, kind: input, shape index: {}]
  %s2 = inlined_call_operand.vmem [shape: f32[1,128], index: 2, kind: input, shape index: {}]
  %s3 = inlined_call_operand.vmem [shape: f32[4608,128], index: 3, kind: output, shape index: {}]
  %s4 = sld [smem:[#allocation0]]
  $region53: #{matmul_bias_act.1} parent=0
    _
  %s6 = ssub.s32 1, %s4
  %s7 = scalar_select 0, %s6, %s4
  loop: start=0, step=1, limit=20
  $region2: #{matmul_bias_act.1} parent=0 // loop_pre_header
    _
  $region3: #{matmul_bias_act.1} parent=0 // loop_header
    %s9 = sphi 0, %s13
    %p10 = scmp.ge.s32.totalorder %s9, 20
    %s16 = sphi 0, %s35
    %s17 = sphi 0, %s31
    %s18 = sphi 0, %s27
    %s19 = sphi 0, %s16
    %s20 = sphi 0, %s17
    %s21 = sphi 0, %s18
    %s22 = sphi 0, %s19
    %s23 = sphi 0, %s20
    %s24 = sphi 0, %s21
    %s40 = sphi 0, %s42
    %s43 = sphi 0, %s40
    %s44 = sphi 0, %s43
    %s60 = sphi 0, %s44
    %s68 = sphi 0, %s70
    %s71 = sphi 0, %s68
    %s72 = sphi 0, %s71
    %s88 = sphi 0, %s72
    %s94 = sphi 0, %s96
    %s97 = sphi 0, %s94
    %s98 = sphi 0, %s97
    %s114 = sphi 0, %s98
    %s122 = sphi 0, %s124
    %s125 = sphi 0, %s122
    %s126 = sphi 0, %s125
    %s142 = sphi 0, %s126
  $region4: #{matmul_bias_act.1} parent=0 // loop_header_branch
    %12 = sbr.rel (%p10) target = $region8
  $region5: #{matmul_bias_act.1} parent=0 // loop_body
    %s14 = ssub.s32 %s9, 1
    %s15 = ssub.s32 %s9, 2
    %s25 = sadd.s32 1, %s18
    %p26 = scmp.ge.s32.totalorder %s25, 1
    %s27 = scalar_select %p26, 0, %s25
    %s28 = sadd.s32 1, %s17
    %s29 = scalar_select %p26, %s28, %s17
    %p30 = scmp.ge.s32.totalorder %s29, 1
    %s31 = scalar_select %p30, 0, %s29
    %s32 = sadd.s32 1, %s16
    %s33 = scalar_select %p30, %s32, %s16
    %p34 = scmp.ge.s32.totalorder %s33, 18
    %s35 = scalar_select %p34, 0, %s33
    %s36 = ssub.s32 %s16, %s35
    %s37 = ssub.s32 %s18, %s27
    %s38 = sor.u32 %s36, %s37
    %p39 = scmp.eq.s32.totalorder %s38, 0
    %s41 = sadd.s32 %s40, 1
    %s42 = scalar_select %p39, %s40, %s41
    %p45 = pneg %p39
    %p46 = scmp.eq.s32.totalorder %s9, 17
    %p47 = por %p45, %p46
    %p48 = scmp.ne.s32.totalorder %s40, %s43
    %p49 = scmp.eq.s32.totalorder %s9, 0
    %p50 = por %p48, %p49
    %p51 = scmp.ne.s32.totalorder %s40, %s43
    %p52 = scmp.eq.s32.totalorder %s14, 17
    %p53 = por %p51, %p52
    %p54 = scmp.ne.s32.totalorder %s43, %s44
    %p55 = scmp.eq.s32.totalorder %s14, 0
    %p56 = por %p54, %p55
    %p57 = scmp.ne.s32.totalorder %s43, %s44
    %p58 = scmp.eq.s32.totalorder %s15, 17
    %p59 = por %p57, %p58
    %p61 = scmp.ne.s32.totalorder %s44, %s60
    %p62 = scmp.eq.s32.totalorder %s15, 0
    %p63 = por %p61, %p62
    %s64 = ssub.s32 %s18, %s27
    %s65 = ssub.s32 %s17, %s31
    %s66 = sor.u32 %s64, %s65
    %p67 = scmp.eq.s32.totalorder %s66, 0
    %s69 = sadd.s32 %s68, 1
    %s70 = scalar_select %p67, %s68, %s69
    %p73 = pneg %p67
    %p74 = scmp.eq.s32.totalorder %s9, 17
    %p75 = por %p73, %p74
    %p76 = scmp.ne.s32.totalorder %s68, %s71
    %p77 = scmp.eq.s32.totalorder %s9, 0
    %p78 = por %p76, %p77
    %p79 = scmp.ne.s32.totalorder %s68, %s71
    %p80 = scmp.eq.s32.totalorder %s14, 17
    %p81 = por %p79, %p80
    %p82 = scmp.ne.s32.totalorder %s71, %s72
    %p83 = scmp.eq.s32.totalorder %s14, 0
    %p84 = por %p82, %p83
    %p85 = scmp.ne.s32.totalorder %s71, %s72
    %p86 = scmp.eq.s32.totalorder %s15, 17
    %p87 = por %p85, %p86
    %p89 = scmp.ne.s32.totalorder %s72, %s88
    %p90 = scmp.eq.s32.totalorder %s15, 0
    %p91 = por %p89, %p90
    %s92 = ssub.s32 %s17, %s31
    %p93 = scmp.eq.s32.totalorder %s92, 0
    %s95 = sadd.s32 %s94, 1
    %s96 = scalar_select %p93, %s94, %s95
    %p99 = pneg %p93
    %p100 = scmp.eq.s32.totalorder %s9, 17
    %p101 = por %p99, %p100
    %p102 = scmp.ne.s32.totalorder %s94, %s97
    %p103 = scmp.eq.s32.totalorder %s9, 0
    %p104 = por %p102, %p103
    %p105 = scmp.ne.s32.totalorder %s94, %s97
    %p106 = scmp.eq.s32.totalorder %s14, 17
    %p107 = por %p105, %p106
    %p108 = scmp.ne.s32.totalorder %s97, %s98
    %p109 = scmp.eq.s32.totalorder %s14, 0
    %p110 = por %p108, %p109
    %p111 = scmp.ne.s32.totalorder %s97, %s98
    %p112 = scmp.eq.s32.totalorder %s15, 17
    %p113 = por %p111, %p112
    %p115 = scmp.ne.s32.totalorder %s98, %s114
    %p116 = scmp.eq.s32.totalorder %s15, 0
    %p117 = por %p115, %p116
    %s118 = ssub.s32 %s16, %s35
    %s119 = ssub.s32 %s17, %s31
    %s120 = sor.u32 %s118, %s119
    %p121 = scmp.eq.s32.totalorder %s120, 0
    %s123 = sadd.s32 %s122, 1
    %s124 = scalar_select %p121, %s122, %s123
    %p127 = pneg %p121
    %p128 = scmp.eq.s32.totalorder %s9, 17
    %p129 = por %p127, %p128
    %p130 = scmp.ne.s32.totalorder %s122, %s125
    %p131 = scmp.eq.s32.totalorder %s9, 0
    %p132 = por %p130, %p131
    %p133 = scmp.ne.s32.totalorder %s122, %s125
    %p134 = scmp.eq.s32.totalorder %s14, 17
    %p135 = por %p133, %p134
    %p136 = scmp.ne.s32.totalorder %s125, %s126
    %p137 = scmp.eq.s32.totalorder %s14, 0
    %p138 = por %p136, %p137
    %p139 = scmp.ne.s32.totalorder %s125, %s126
    %p140 = scmp.eq.s32.totalorder %s15, 17
    %p141 = por %p139, %p140
    %p143 = scmp.ne.s32.totalorder %s126, %s142
    %p144 = scmp.eq.s32.totalorder %s15, 0
    %p145 = por %p143, %p144
    %p146 = scmp.le.s32.totalorder 1, %s9
    %p147 = scmp.lt.s32.totalorder %s9, 19
    %p148 = pnand %p146, %p147
    %p149 = pneg %p148
    // Predicated region
    $region9: #{matmul_bias_act.1} parent=5 // pred_check
      _
    $region10: #{matmul_bias_act.1} parent=5 // pred_check_branch
      %151 = sbr.rel (%p148) target = $region12
    $region11: #{matmul_bias_act.1} parent=5 // pred_region
      %s152 = ssub.s32 %s9, 1
      // Predicated region
      $region13: #{matmul_bias_act.1} parent=11 // pred_check
        %p153 = pneg %p84
      $region14: #{matmul_bias_act.1} parent=11 // pred_check_branch
        %155 = sbr.rel (%p153) target = $region16
      $region15: #{matmul_bias_act.1} parent=11 // pred_region
        %s156 = smul.u32 32, %s21
        %p157 = scmp.lt.s32.totalorder %s156, 31
        %s158 = scalar_select %p157, %s156, 31
        %p159 = scmp.lt.s32.totalorder %s20, 0
        %s160 = scalar_select %p159, %s20, 0
        %s161 = sadd.s32 %s160, %s158
        %s162 = smul.addr %s161, 4
        %s163 = scalar_lea.vmem %s1, %s162
        %s164 = smul.u32 32, %s21
      $region16: #{matmul_bias_act.1} parent=11 // pred_fallthru
        _
      // Predicated region
      $region17: #{matmul_bias_act.1} parent=11 // pred_check
        %p165 = pneg %p110
      $region18: #{matmul_bias_act.1} parent=11 // pred_check_branch
        %167 = sbr.rel (%p165) target = $region20
      $region19: #{matmul_bias_act.1} parent=11 // pred_region
        %p168 = scmp.lt.s32.totalorder %s20, 0
        %s169 = scalar_select %p168, %s20, 0
        %s170 = scalar_lea.vmem %s2, %s169
      $region20: #{matmul_bias_act.1} parent=11 // pred_fallthru
        _
    $region12: #{matmul_bias_act.1} parent=5 // pred_fallthru
      _
    %p171 = scmp.lt.s32.totalorder %s9, 18
    // Predicated region
    $region21: #{matmul_bias_act.1} parent=5 // pred_check
      %p172 = pneg %p171
    $region22: #{matmul_bias_act.1} parent=5 // pred_check_branch
      %174 = sbr.rel (%p172) target = $region24
    $region23: #{matmul_bias_act.1} parent=5 // pred_region
      // Predicated region
      $region25: #{matmul_bias_act.1} parent=23 // pred_check
        %p175 = pneg %p50
      $region26: #{matmul_bias_act.1} parent=23 // pred_check_branch
        %177 = sbr.rel (%p175) target = $region28
      $region27: #{matmul_bias_act.1} parent=23 // pred_region
        %s178 = smul.u32 32, %s16
        %s179 = smul.u32 2, %s18
        %p180 = scmp.lt.s32.totalorder %s178, 575
        %s181 = scalar_select %p180, %s178, 575
        %p182 = scmp.lt.s32.totalorder %s179, 1
        %s183 = scalar_select %p182, %s179, 1
        %s184 = smul.addr %s181, 2
        %s185 = sadd.s32 %s183, %s184
        %s186 = smul.addr %s185, 4
        %s187 = scalar_lea.vmem %s0, %s186
        %s188 = smul.u32 32, %s16
        %s189 = smul.u32 2, %s18
      $region28: #{matmul_bias_act.1} parent=23 // pred_fallthru
        _
    $region24: #{matmul_bias_act.1} parent=5 // pred_fallthru
      _
    %p190 = scmp.le.s32.totalorder 1, %s9
    %p191 = scmp.lt.s32.totalorder %s9, 19
    %p192 = pnand %p190, %p191
    %p193 = pneg %p192
    // Predicated region
    $region29: #{matmul_bias_act.1} parent=5 // pred_check
      _
    $region30: #{matmul_bias_act.1} parent=5 // pred_check_branch
      %195 = sbr.rel (%p192) target = $region32
    $region31: #{matmul_bias_act.1} parent=5 // pred_region
      %s196 = ssub.s32 %s9, 1
      %s197 = smul.u32 32, %s19
      %s198 = smul.u32 2, %s21
      %p199 = scmp.lt.s32.totalorder %s197, 575
      %s200 = scalar_select %p199, %s197, 575
      %p201 = scmp.lt.s32.totalorder %s198, 1
      %s202 = scalar_select %p201, %s198, 1
      %s203 = smul.addr %s200, 2
      %s204 = sadd.s32 %s202, %s203
      %s205 = smul.addr %s204, 4
      %s206 = scalar_lea.vmem %s0, %s205
      %p207 = pneg %p56
      %p208 = pneg %p53
      %s209 = smul.u32 32, %s21
      %p210 = scmp.lt.s32.totalorder %s209, 31
      %s211 = scalar_select %p210, %s209, 31
      %p212 = scmp.lt.s32.totalorder %s20, 0
      %s213 = scalar_select %p212, %s20, 0
      %s214 = sadd.s32 %s213, %s211
      %s215 = smul.addr %s214, 4
      %s216 = scalar_lea.vmem %s1, %s215
      %p217 = pneg %p84
      %p218 = pneg %p81
      %p219 = scmp.lt.s32.totalorder %s20, 0
      %s220 = scalar_select %p219, %s20, 0
      %s221 = scalar_lea.vmem %s2, %s220
      %p222 = pneg %p110
      %p223 = pneg %p107
      %p224 = pneg %p138
      %p225 = pneg %p135
      %s226 = smul.u32 32, %s19
      %p227 = scmp.lt.s32.totalorder %s226, 575
      %s228 = scalar_select %p227, %s226, 575
      %p229 = scmp.lt.s32.totalorder %s20, 0
      %s230 = scalar_select %p229, %s20, 0
      %s231 = sadd.s32 %s230, %s228
      %s232 = smul.addr %s231, 8
      %s233 = scalar_lea.vmem %s3, %s232
      %s234 = smul.u32 32, %s19
      %s235 = smul.u32 2, %s21
      %p236 = scmp.lt.s32.totalorder %s234, 575
      %s237 = scalar_select %p236, %s234, 575
      %p238 = scmp.lt.s32.totalorder %s235, 1
      %s239 = scalar_select %p238, %s235, 1
      %s240 = smul.addr %s237, 2
      %s241 = sadd.s32 %s239, %s240
      %s242 = smul.addr %s241, 4
      %s243 = scalar_lea.vmem %s0, %s242
      %s244 = smul.u32 32, %s19
      %s245 = smul.u32 2, %s21
      %s246 = smul.u32 32, %s21
      %p247 = scmp.lt.s32.totalorder %s246, 31
      %s248 = scalar_select %p247, %s246, 31
      %p249 = scmp.lt.s32.totalorder %s20, 0
      %s250 = scalar_select %p249, %s20, 0
      %s251 = sadd.s32 %s250, %s248
      %s252 = smul.addr %s251, 4
      %s253 = scalar_lea.vmem %s1, %s252
      %s254 = smul.u32 32, %s21
      %p255 = scmp.lt.s32.totalorder %s20, 0
      %s256 = scalar_select %p255, %s20, 0
      %s257 = scalar_lea.vmem %s2, %s256
      %s258 = smul.u32 32, %s19
      %p259 = scmp.lt.s32.totalorder %s258, 575
      %s260 = scalar_select %p259, %s258, 575
      %p261 = scmp.lt.s32.totalorder %s20, 0
      %s262 = scalar_select %p261, %s20, 0
      %s263 = sadd.s32 %s262, %s260
      %s264 = smul.addr %s263, 8
      %s265 = scalar_lea.vmem %s3, %s264
      %s266 = smul.u32 32, %s19
      %p268 = scmp.eq.s32.totalorder %s21, 0
      // Predicated region
      $region33: #{matmul_bias_act.1} parent=31 // pred_check
        %p269 = pneg %p268
      $region34: #{matmul_bias_act.1} parent=31 // pred_check_branch
        %271 = sbr.rel (%p269) target = $region36
      $region35: #{matmul_bias_act.1} parent=31 // pred_region
        %272 = vst [vmem:[#allocation2] sm:$0xff] 0.0
        %273 = vst [vmem:[#allocation2 + $0x8] sm:$0xff] 0.0
        %274 = vst [vmem:[#allocation2 + $0x10] sm:$0xff] 0.0
        %275 = vst [vmem:[#allocation2 + $0x18] sm:$0xff] 0.0
        %276 = vst [vmem:[#allocation2 + $0x20] sm:$0xff] 0.0
        %277 = vst [vmem:[#allocation2 + $0x28] sm:$0xff] 0.0
        %278 = vst [vmem:[#allocation2 + $0x30] sm:$0xff] 0.0
        %279 = vst [vmem:[#allocation2 + $0x38] sm:$0xff] 0.0
        %280 = vst [vmem:[#allocation2 + $0x40] sm:$0xff] 0.0
        %281 = vst [vmem:[#allocation2 + $0x48] sm:$0xff] 0.0
        %282 = vst [vmem:[#allocation2 + $0x50] sm:$0xff] 0.0
        %283 = vst [vmem:[#allocation2 + $0x58] sm:$0xff] 0.0
        %284 = vst [vmem:[#allocation2 + $0x60] sm:$0xff] 0.0
        %285 = vst [vmem:[#allocation2 + $0x68] sm:$0xff] 0.0
        %286 = vst [vmem:[#allocation2 + $0x70] sm:$0xff] 0.0
        %287 = vst [vmem:[#allocation2 + $0x78] sm:$0xff] 0.0
        %288 = vst [vmem:[#allocation2 + $0x80] sm:$0xff] 0.0
        %289 = vst [vmem:[#allocation2 + $0x88] sm:$0xff] 0.0
        %290 = vst [vmem:[#allocation2 + $0x90] sm:$0xff] 0.0
        %291 = vst [vmem:[#allocation2 + $0x98] sm:$0xff] 0.0
        %292 = vst [vmem:[#allocation2 + $0xa0] sm:$0xff] 0.0
        %293 = vst [vmem:[#allocation2 + $0xa8] sm:$0xff] 0.0
        %294 = vst [vmem:[#allocation2 + $0xb0] sm:$0xff] 0.0
        %295 = vst [vmem:[#allocation2 + $0xb8] sm:$0xff] 0.0
        %296 = vst [vmem:[#allocation2 + $0xc0] sm:$0xff] 0.0
        %297 = vst [vmem:[#allocation2 + $0xc8] sm:$0xff] 0.0
        %298 = vst [vmem:[#allocation2 + $0xd0] sm:$0xff] 0.0
        %299 = vst [vmem:[#allocation2 + $0xd8] sm:$0xff] 0.0
        %300 = vst [vmem:[#allocation2 + $0xe0] sm:$0xff] 0.0
        %301 = vst [vmem:[#allocation2 + $0xe8] sm:$0xff] 0.0
        %302 = vst [vmem:[#allocation2 + $0xf0] sm:$0xff] 0.0
        %303 = vst [vmem:[#allocation2 + $0xf8] sm:$0xff] 0.0
      $region36: #{matmul_bias_act.1} parent=31 // pred_fallthru
        _
      %v304 = vld [vmem:[#allocation2] sm:$0xff]
      %v305 = vld [vmem:[#allocation2 + $0x8] sm:$0xff]
      %v306 = vld [vmem:[#allocation2 + $0x10] sm:$0xff]
      %v307 = vld [vmem:[#allocation2 + $0x18] sm:$0xff]
      %v308 = vld [vmem:[#allocation2 + $0x20] sm:$0xff]
      %v309 = vld [vmem:[#allocation2 + $0x28] sm:$0xff]
      %v310 = vld [vmem:[#allocation2 + $0x30] sm:$0xff]
      %v311 = vld [vmem:[#allocation2 + $0x38] sm:$0xff]
      %v312 = vld [vmem:[#allocation2 + $0x40] sm:$0xff]
      %v313 = vld [vmem:[#allocation2 + $0x48] sm:$0xff]
      %v314 = vld [vmem:[#allocation2 + $0x50] sm:$0xff]
      %v315 = vld [vmem:[#allocation2 + $0x58] sm:$0xff]
      %v316 = vld [vmem:[#allocation2 + $0x60] sm:$0xff]
      %v317 = vld [vmem:[#allocation2 + $0x68] sm:$0xff]
      %v318 = vld [vmem:[#allocation2 + $0x70] sm:$0xff]
      %v319 = vld [vmem:[#allocation2 + $0x78] sm:$0xff]
      %v320 = vld [vmem:[#allocation2 + $0x80] sm:$0xff]
      %v321 = vld [vmem:[#allocation2 + $0x88] sm:$0xff]
      %v322 = vld [vmem:[#allocation2 + $0x90] sm:$0xff]
      %v323 = vld [vmem:[#allocation2 + $0x98] sm:$0xff]
      %v324 = vld [vmem:[#allocation2 + $0xa0] sm:$0xff]
      %v325 = vld [vmem:[#allocation2 + $0xa8] sm:$0xff]
      %v326 = vld [vmem:[#allocation2 + $0xb0] sm:$0xff]
      %v327 = vld [vmem:[#allocation2 + $0xb8] sm:$0xff]
      %v328 = vld [vmem:[#allocation2 + $0xc0] sm:$0xff]
      %v329 = vld [vmem:[#allocation2 + $0xc8] sm:$0xff]
      %v330 = vld [vmem:[#allocation2 + $0xd0] sm:$0xff]
      %v331 = vld [vmem:[#allocation2 + $0xd8] sm:$0xff]
      %v332 = vld [vmem:[#allocation2 + $0xe0] sm:$0xff]
      %v333 = vld [vmem:[#allocation2 + $0xe8] sm:$0xff]
      %v334 = vld [vmem:[#allocation2 + $0xf0] sm:$0xff]
      %v335 = vld [vmem:[#allocation2 + $0xf8] sm:$0xff]
      %v336 = vld [vmem:[%s243] sm:$0xff]
      %v337 = vld [vmem:[%s243 + $0x8] sm:$0xff]
      %v338 = vld [vmem:[%s243 + $0x10] sm:$0xff]
      %v339 = vld [vmem:[%s243 + $0x18] sm:$0xff]
      %v340 = vld [vmem:[%s243 + $0x20] sm:$0xff]
      %v341 = vld [vmem:[%s243 + $0x28] sm:$0xff]
      %v342 = vld [vmem:[%s243 + $0x30] sm:$0xff]
      %v343 = vld [vmem:[%s243 + $0x38] sm:$0xff]
      %v344 = vld [vmem:[%s243 + $0x40] sm:$0xff]
      %v345 = vld [vmem:[%s243 + $0x48] sm:$0xff]
      %v346 = vld [vmem:[%s243 + $0x50] sm:$0xff]
      %v347 = vld [vmem:[%s243 + $0x58] sm:$0xff]
      %v348 = vld [vmem:[%s243 + $0x60] sm:$0xff]
      %v349 = vld [vmem:[%s243 + $0x68] sm:$0xff]
      %v350 = vld [vmem:[%s243 + $0x70] sm:$0xff]
      %v351 = vld [vmem:[%s243 + $0x78] sm:$0xff]
      %v352 = vld [vmem:[%s243 + $0x80] sm:$0xff]
      %v353 = vld [vmem:[%s243 + $0x88] sm:$0xff]
      %v354 = vld [vmem:[%s243 + $0x90] sm:$0xff]
      %v355 = vld [vmem:[%s243 + $0x98] sm:$0xff]
      %v356 = vld [vmem:[%s243 + $0xa0] sm:$0xff]
      %v357 = vld [vmem:[%s243 + $0xa8] sm:$0xff]
      %v358 = vld [vmem:[%s243 + $0xb0] sm:$0xff]
      %v359 = vld [vmem:[%s243 + $0xb8] sm:$0xff]
      %v360 = vld [vmem:[%s243 + $0xc0] sm:$0xff]
      %v361 = vld [vmem:[%s243 + $0xc8] sm:$0xff]
      %v362 = vld [vmem:[%s243 + $0xd0] sm:$0xff]
      %v363 = vld [vmem:[%s243 + $0xd8] sm:$0xff]
      %v364 = vld [vmem:[%s243 + $0xe0] sm:$0xff]
      %v365 = vld [vmem:[%s243 + $0xe8] sm:$0xff]
      %v366 = vld [vmem:[%s243 + $0xf0] sm:$0xff]
      %v367 = vld [vmem:[%s243 + $0xf8] sm:$0xff]
      %v368 = vld [vmem:[%s253] sm:$0xf]
      %v369 = vld [vmem:[%s253 + $0x4] sm:$0xf]
      %v370 = vld [vmem:[%s253 + $0x8] sm:$0xf]
      %v371 = vld [vmem:[%s253 + $0xc] sm:$0xf]
      %v372 = vld [vmem:[%s253 + $0x10] sm:$0xf]
      %v373 = vld [vmem:[%s253 + $0x14] sm:$0xf]
      %v374 = vld [vmem:[%s253 + $0x18] sm:$0xf]
      %v375 = vld [vmem:[%s253 + $0x1c] sm:$0xf]
      %v376 = vld [vmem:[%s253 + $0x20] sm:$0xf]
      %v377 = vld [vmem:[%s253 + $0x24] sm:$0xf]
      %v378 = vld [vmem:[%s253 + $0x28] sm:$0xf]
      %v379 = vld [vmem:[%s253 + $0x2c] sm:$0xf]
      %v380 = vld [vmem:[%s253 + $0x30] sm:$0xf]
      %v381 = vld [vmem:[%s253 + $0x34] sm:$0xf]
      %v382 = vld [vmem:[%s253 + $0x38] sm:$0xf]
      %v383 = vld [vmem:[%s253 + $0x3c] sm:$0xf]
      %v384 = vld [vmem:[%s253 + $0x40] sm:$0xf]
      %v385 = vld [vmem:[%s253 + $0x44] sm:$0xf]
      %v386 = vld [vmem:[%s253 + $0x48] sm:$0xf]
      %v387 = vld [vmem:[%s253 + $0x4c] sm:$0xf]
      %v388 = vld [vmem:[%s253 + $0x50] sm:$0xf]
      %v389 = vld [vmem:[%s253 + $0x54] sm:$0xf]
      %v390 = vld [vmem:[%s253 + $0x58] sm:$0xf]
      %v391 = vld [vmem:[%s253 + $0x5c] sm:$0xf]
      %v392 = vld [vmem:[%s253 + $0x60] sm:$0xf]
      %v393 = vld [vmem:[%s253 + $0x64] sm:$0xf]
      %v394 = vld [vmem:[%s253 + $0x68] sm:$0xf]
      %v395 = vld [vmem:[%s253 + $0x6c] sm:$0xf]
      %v396 = vld [vmem:[%s253 + $0x70] sm:$0xf]
      %v397 = vld [vmem:[%s253 + $0x74] sm:$0xf]
      %v398 = vld [vmem:[%s253 + $0x78] sm:$0xf]
      %v399 = vld [vmem:[%s253 + $0x7c] sm:$0xf]
      %v432 = vunpack.c.l.b16 %v336
      %v433 = vunpack.c.h.b16 %v336
      %v434 = vunpack.c.l.b16 %v337
      %v435 = vunpack.c.h.b16 %v337
      %v436 = vunpack.c.l.b16 %v338
      %v437 = vunpack.c.h.b16 %v338
      %v438 = vunpack.c.l.b16 %v339
      %v439 = vunpack.c.h.b16 %v339
      %v440 = vunpack.c.l.b16 %v340
      %v441 = vunpack.c.h.b16 %v340
      %v442 = vunpack.c.l.b16 %v341
      %v443 = vunpack.c.h.b16 %v341
      %v444 = vunpack.c.l.b16 %v342
      %v445 = vunpack.c.h.b16 %v342
      %v446 = vunpack.c.l.b16 %v343
      %v447 = vunpack.c.h.b16 %v343
      %v448 = vunpack.c.l.b16 %v344
      %v449 = vunpack.c.h.b16 %v344
      %v450 = vunpack.c.l.b16 %v345
      %v451 = vunpack.c.h.b16 %v345
      %v452 = vunpack.c.l.b16 %v346
      %v453 = vunpack.c.h.b16 %v346
      %v454 = vunpack.c.l.b16 %v347
      %v455 = vunpack.c.h.b16 %v347
      %v456 = vunpack.c.l.b16 %v348
      %v457 = vunpack.c.h.b16 %v348
      %v458 = vunpack.c.l.b16 %v349
      %v459 = vunpack.c.h.b16 %v349
      %v460 = vunpack.c.l.b16 %v350
      %v461 = vunpack.c.h.b16 %v350
      %v462 = vunpack.c.l.b16 %v351
      %v463 = vunpack.c.h.b16 %v351
      %v464 = vunpack.c.l.b16 %v352
      %v465 = vunpack.c.h.b16 %v352
      %v466 = vunpack.c.l.b16 %v353
      %v467 = vunpack.c.h.b16 %v353
      %v468 = vunpack.c.l.b16 %v354
      %v469 = vunpack.c.h.b16 %v354
      %v470 = vunpack.c.l.b16 %v355
      %v471 = vunpack.c.h.b16 %v355
      %v472 = vunpack.c.l.b16 %v356
      %v473 = vunpack.c.h.b16 %v356
      %v474 = vunpack.c.l.b16 %v357
      %v475 = vunpack.c.h.b16 %v357
      %v476 = vunpack.c.l.b16 %v358
      %v477 = vunpack.c.h.b16 %v358
      %v478 = vunpack.c.l.b16 %v359
      %v479 = vunpack.c.h.b16 %v359
      %v480 = vunpack.c.l.b16 %v360
      %v481 = vunpack.c.h.b16 %v360
      %v482 = vunpack.c.l.b16 %v361
      %v483 = vunpack.c.h.b16 %v361
      %v484 = vunpack.c.l.b16 %v362
      %v485 = vunpack.c.h.b16 %v362
      %v486 = vunpack.c.l.b16 %v363
      %v487 = vunpack.c.h.b16 %v363
      %v488 = vunpack.c.l.b16 %v364
      %v489 = vunpack.c.h.b16 %v364
      %v490 = vunpack.c.l.b16 %v365
      %v491 = vunpack.c.h.b16 %v365
      %v492 = vunpack.c.l.b16 %v366
      %v493 = vunpack.c.h.b16 %v366
      %v494 = vunpack.c.l.b16 %v367
      %v495 = vunpack.c.h.b16 %v367
      %v496 = vpack.c.b16 %v434, %v432
      %v497 = vpack.c.b16 %v435, %v433
      %v498 = vpack.c.b16 %v438, %v436
      %v499 = vpack.c.b16 %v439, %v437
      %v500 = vpack.c.b16 %v442, %v440
      %v501 = vpack.c.b16 %v443, %v441
      %v502 = vpack.c.b16 %v446, %v444
      %v503 = vpack.c.b16 %v447, %v445
      %v504 = vpack.c.b16 %v450, %v448
      %v505 = vpack.c.b16 %v451, %v449
      %v506 = vpack.c.b16 %v454, %v452
      %v507 = vpack.c.b16 %v455, %v453
      %v508 = vpack.c.b16 %v458, %v456
      %v509 = vpack.c.b16 %v459, %v457
      %v510 = vpack.c.b16 %v462, %v460
      %v511 = vpack.c.b16 %v463, %v461
      %v512 = vpack.c.b16 %v466, %v464
      %v513 = vpack.c.b16 %v467, %v465
      %v514 = vpack.c.b16 %v470, %v468
      %v515 = vpack.c.b16 %v471, %v469
      %v516 = vpack.c.b16 %v474, %v472
      %v517 = vpack.c.b16 %v475, %v473
      %v518 = vpack.c.b16 %v478, %v476
      %v519 = vpack.c.b16 %v479, %v477
      %v520 = vpack.c.b16 %v482, %v480
      %v521 = vpack.c.b16 %v483, %v481
      %v522 = vpack.c.b16 %v486, %v484
      %v523 = vpack.c.b16 %v487, %v485
      %v524 = vpack.c.b16 %v490, %v488
      %v525 = vpack.c.b16 %v491, %v489
      %v526 = vpack.c.b16 %v494, %v492
      %v527 = vpack.c.b16 %v495, %v493
      %v592 = vunpack.c.l.b16 %v368
      %v593 = vunpack.c.l.b16 %v369
      %v594 = vunpack.c.l.b16 %v370
      %v595 = vunpack.c.l.b16 %v371
      %v596 = vunpack.c.l.b16 %v372
      %v597 = vunpack.c.l.b16 %v373
      %v598 = vunpack.c.l.b16 %v374
      %v599 = vunpack.c.l.b16 %v375
      %v600 = vunpack.c.l.b16 %v376
      %v601 = vunpack.c.l.b16 %v377
      %v602 = vunpack.c.l.b16 %v378
      %v603 = vunpack.c.l.b16 %v379
      %v604 = vunpack.c.l.b16 %v380
      %v605 = vunpack.c.l.b16 %v381
      %v606 = vunpack.c.l.b16 %v382
      %v607 = vunpack.c.l.b16 %v383
      %v608 = vunpack.c.l.b16 %v384
      %v609 = vunpack.c.l.b16 %v385
      %v610 = vunpack.c.l.b16 %v386
      %v611 = vunpack.c.l.b16 %v387
      %v612 = vunpack.c.l.b16 %v388
      %v613 = vunpack.c.l.b16 %v389
      %v614 = vunpack.c.l.b16 %v390
      %v615 = vunpack.c.l.b16 %v391
      %v616 = vunpack.c.l.b16 %v392
      %v617 = vunpack.c.l.b16 %v393
      %v618 = vunpack.c.l.b16 %v394
      %v619 = vunpack.c.l.b16 %v395
      %v620 = vunpack.c.l.b16 %v396
      %v621 = vunpack.c.l.b16 %v397
      %v622 = vunpack.c.l.b16 %v398
      %v623 = vunpack.c.l.b16 %v399
      %v624 = vpack.c.b16 %v593, %v592
      %v625 = vpack.c.b16 %v595, %v594
      %v626 = vpack.c.b16 %v597, %v596
      %v627 = vpack.c.b16 %v599, %v598
      %v628 = vpack.c.b16 %v601, %v600
      %v629 = vpack.c.b16 %v603, %v602
      %v630 = vpack.c.b16 %v605, %v604
      %v631 = vpack.c.b16 %v607, %v606
      %v632 = vpack.c.b16 %v609, %v608
      %v633 = vpack.c.b16 %v611, %v610
      %v634 = vpack.c.b16 %v613, %v612
      %v635 = vpack.c.b16 %v615, %v614
      %v636 = vpack.c.b16 %v617, %v616
      %v637 = vpack.c.b16 %v619, %v618
      %v638 = vpack.c.b16 %v621, %v620
      %v639 = vpack.c.b16 %v623, %v622
      %656 = vmatprep.subr.bf16.mxu0 0
      %657 = vmatpush1.bf16.msra.mxu0 %v624
      %658 = vmatprep.subr.bf16.mxu0 0
      %659 = vmatpush1.bf16.msra.mxu0 %v625
      %660 = vmatprep.subr.bf16.mxu0 0
      %661 = vmatpush1.bf16.msra.mxu0 %v626
      %662 = vmatprep.subr.bf16.mxu0 0
      %663 = vmatpush1.bf16.msra.mxu0 %v627
      %664 = vmatprep.subr.bf16.mxu0 0
      %665 = vmatpush1.bf16.msra.mxu0 %v628
      %666 = vmatprep.subr.bf16.mxu0 0
      %667 = vmatpush1.bf16.msra.mxu0 %v629
      %668 = vmatprep.subr.bf16.mxu0 0
      %669 = vmatpush1.bf16.msra.mxu0 %v630
      %670 = vmatprep.subr.bf16.mxu0 0
      %671 = vmatpush1.bf16.msra.mxu0 %v631
      %672 = vmatprep.subr.bf16.mxu0 0
      %673 = vmatpush1.bf16.msra.mxu0 %v632
      %674 = vmatprep.subr.bf16.mxu0 0
      %675 = vmatpush1.bf16.msra.mxu0 %v633
      %676 = vmatprep.subr.bf16.mxu0 0
      %677 = vmatpush1.bf16.msra.mxu0 %v634
      %678 = vmatprep.subr.bf16.mxu0 0
      %679 = vmatpush1.bf16.msra.mxu0 %v635
      %680 = vmatprep.subr.bf16.mxu0 0
      %681 = vmatpush1.bf16.msra.mxu0 %v636
      %682 = vmatprep.subr.bf16.mxu0 0
      %683 = vmatpush1.bf16.msra.mxu0 %v637
      %684 = vmatprep.subr.bf16.mxu0 0
      %685 = vmatpush1.bf16.msra.mxu0 %v638
      %686 = vmatprep.subr.bf16.mxu0 0
      %687 = vmatpush1.bf16.msra.mxu0 %v639
      %688 = vmatprep.mubr.bf16.mxu0 %v497
      %689 = vmatmul.mubr.bf16.gmra.mrb[0].mxu0 %v496
      %v690 = vpop.f32.mrb[0].mxu0
      %v691 = vadd.f32 0.0, %v690
      %v692 = vpop.f32.mrb[0].mxu0
      %v693 = vpop.f32.mrb[0].mxu0
      %v694 = vadd.f32 0.0, %v693
      %v695 = vpop.f32.mrb[0].mxu0
      %696 = vmatprep.mubr.bf16.mxu0 %v499
      %697 = vmatmul.mubr.bf16.gmra.mrb[0].mxu0 %v498
      %v698 = vpop.f32.mrb[0].mxu0
      %v699 = vadd.f32 0.0, %v698
      %v700 = vpop.f32.mrb[0].mxu0
      %v701 = vpop.f32.mrb[0].mxu0
      %v702 = vadd.f32 0.0, %v701
      %v703 = vpop.f32.mrb[0].mxu0
      %704 = vmatprep.mubr.bf16.mxu0 %v501
      %705 = vmatmul.mubr.bf16.gmra.mrb[0].mxu0 %v500
      %v706 = vpop.f32.mrb[0].mxu0
      %v707 = vadd.f32 0.0, %v706
      %v708 = vpop.f32.mrb[0].mxu0
      %v709 = vpop.f32.mrb[0].mxu0
      %v710 = vadd.f32 0.0, %v709
      %v711 = vpop.f32.mrb[0].mxu0
      %712 = vmatprep.mubr.bf16.mxu0 %v503
      %713 = vmatmul.mubr.bf16.gmra.mrb[0].mxu0 %v502
      %v714 = vpop.f32.mrb[0].mxu0
      %v715 = vadd.f32 0.0, %v714
      %v716 = vpop.f32.mrb[0].mxu0
      %v717 = vpop.f32.mrb[0].mxu0
      %v718 = vadd.f32 0.0, %v717
      %v719 = vpop.f32.mrb[0].mxu0
      %720 = vmatprep.mubr.bf16.mxu0 %v505
      %721 = vmatmul.mubr.bf16.gmra.mrb[0].mxu0 %v504
      %v722 = vpop.f32.mrb[0].mxu0
      %v723 = vadd.f32 0.0, %v722
      %v724 = vpop.f32.mrb[0].mxu0
      %v725 = vpop.f32.mrb[0].mxu0
      %v726 = vadd.f32 0.0, %v725
      %v727 = vpop.f32.mrb[0].mxu0
      %728 = vmatprep.mubr.bf16.mxu0 %v507
      %729 = vmatmul.mubr.bf16.gmra.mrb[0].mxu0 %v506
      %v730 = vpop.f32.mrb[0].mxu0
      %v731 = vadd.f32 0.0, %v730
      %v732 = vpop.f32.mrb[0].mxu0
      %v733 = vpop.f32.mrb[0].mxu0
      %v734 = vadd.f32 0.0, %v733
      %v735 = vpop.f32.mrb[0].mxu0
      %736 = vmatprep.mubr.bf16.mxu0 %v509
      %737 = vmatmul.mubr.bf16.gmra.mrb[0].mxu0 %v508
      %v738 = vpop.f32.mrb[0].mxu0
      %v739 = vadd.f32 0.0, %v738
      %v740 = vpop.f32.mrb[0].mxu0
      %v741 = vpop.f32.mrb[0].mxu0
      %v742 = vadd.f32 0.0, %v741
      %v743 = vpop.f32.mrb[0].mxu0
      %744 = vmatprep.mubr.bf16.mxu0 %v511
      %745 = vmatmul.mubr.bf16.gmra.mrb[0].mxu0 %v510
      %v746 = vpop.f32.mrb[0].mxu0
      %v747 = vadd.f32 0.0, %v746
      %v748 = vpop.f32.mrb[0].mxu0
      %v749 = vpop.f32.mrb[0].mxu0
      %v750 = vadd.f32 0.0, %v749
      %v751 = vpop.f32.mrb[0].mxu0
      %752 = vmatprep.mubr.bf16.mxu0 %v513
      %753 = vmatmul.mubr.bf16.gmra.mrb[0].mxu0 %v512
      %v754 = vpop.f32.mrb[0].mxu0
      %v755 = vadd.f32 0.0, %v754
      %v756 = vpop.f32.mrb[0].mxu0
      %v757 = vpop.f32.mrb[0].mxu0
      %v758 = vadd.f32 0.0, %v757
      %v759 = vpop.f32.mrb[0].mxu0
      %760 = vmatprep.mubr.bf16.mxu0 %v515
      %761 = vmatmul.mubr.bf16.gmra.mrb[0].mxu0 %v514
      %v762 = vpop.f32.mrb[0].mxu0
      %v763 = vadd.f32 0.0, %v762
      %v764 = vpop.f32.mrb[0].mxu0
      %v765 = vpop.f32.mrb[0].mxu0
      %v766 = vadd.f32 0.0, %v765
      %v767 = vpop.f32.mrb[0].mxu0
      %768 = vmatprep.mubr.bf16.mxu0 %v517
      %769 = vmatmul.mubr.bf16.gmra.mrb[0].mxu0 %v516
      %v770 = vpop.f32.mrb[0].mxu0
      %v771 = vadd.f32 0.0, %v770
      %v772 = vpop.f32.mrb[0].mxu0
      %v773 = vpop.f32.mrb[0].mxu0
      %v774 = vadd.f32 0.0, %v773
      %v775 = vpop.f32.mrb[0].mxu0
      %776 = vmatprep.mubr.bf16.mxu0 %v519
      %777 = vmatmul.mubr.bf16.gmra.mrb[0].mxu0 %v518
      %v778 = vpop.f32.mrb[0].mxu0
      %v779 = vadd.f32 0.0, %v778
      %v780 = vpop.f32.mrb[0].mxu0
      %v781 = vpop.f32.mrb[0].mxu0
      %v782 = vadd.f32 0.0, %v781
      %v783 = vpop.f32.mrb[0].mxu0
      %784 = vmatprep.mubr.bf16.mxu0 %v521
      %785 = vmatmul.mubr.bf16.gmra.mrb[0].mxu0 %v520
      %v786 = vpop.f32.mrb[0].mxu0
      %v787 = vadd.f32 0.0, %v786
      %v788 = vpop.f32.mrb[0].mxu0
      %v789 = vpop.f32.mrb[0].mxu0
      %v790 = vadd.f32 0.0, %v789
      %v791 = vpop.f32.mrb[0].mxu0
      %792 = vmatprep.mubr.bf16.mxu0 %v523
      %793 = vmatmul.mubr.bf16.gmra.mrb[0].mxu0 %v522
      %v794 = vpop.f32.mrb[0].mxu0
      %v795 = vadd.f32 0.0, %v794
      %v796 = vpop.f32.mrb[0].mxu0
      %v797 = vpop.f32.mrb[0].mxu0
      %v798 = vadd.f32 0.0, %v797
      %v799 = vpop.f32.mrb[0].mxu0
      %800 = vmatprep.mubr.bf16.mxu0 %v525
      %801 = vmatmul.mubr.bf16.gmra.mrb[0].mxu0 %v524
      %v802 = vpop.f32.mrb[0].mxu0
      %v803 = vadd.f32 0.0, %v802
      %v804 = vpop.f32.mrb[0].mxu0
      %v805 = vpop.f32.mrb[0].mxu0
      %v806 = vadd.f32 0.0, %v805
      %v807 = vpop.f32.mrb[0].mxu0
      %808 = vmatprep.mubr.bf16.mxu0 %v527
      %809 = vmatmul.mubr.bf16.gmra.mrb[0].mxu0 %v526
      %v810 = vpop.f32.mrb[0].mxu0
      %v811 = vadd.f32 0.0, %v810
      %v812 = vpop.f32.mrb[0].mxu0
      %v813 = vpop.f32.mrb[0].mxu0
      %v814 = vadd.f32 0.0, %v813
      %v815 = vpop.f32.mrb[0].mxu0
      %816 = vdwg.mxu0
      %v817 = vadd.f32 %v304, %v691
      %v818 = vadd.f32 %v305, %v694
      %v819 = vadd.f32 %v306, %v699
      %v820 = vadd.f32 %v307, %v702
      %v821 = vadd.f32 %v308, %v707
      %v822 = vadd.f32 %v309, %v710
      %v823 = vadd.f32 %v310, %v715
      %v824 = vadd.f32 %v311, %v718
      %v825 = vadd.f32 %v312, %v723
      %v826 = vadd.f32 %v313, %v726
      %v827 = vadd.f32 %v314, %v731
      %v828 = vadd.f32 %v315, %v734
      %v829 = vadd.f32 %v316, %v739
      %v830 = vadd.f32 %v317, %v742
      %v831 = vadd.f32 %v318, %v747
      %v832 = vadd.f32 %v319, %v750
      %v833 = vadd.f32 %v320, %v755
      %v834 = vadd.f32 %v321, %v758
      %v835 = vadd.f32 %v322, %v763
      %v836 = vadd.f32 %v323, %v766
      %v837 = vadd.f32 %v324, %v771
      %v838 = vadd.f32 %v325, %v774
      %v839 = vadd.f32 %v326, %v779
      %v840 = vadd.f32 %v327, %v782
      %v841 = vadd.f32 %v328, %v787
      %v842 = vadd.f32 %v329, %v790
      %v843 = vadd.f32 %v330, %v795
      %v844 = vadd.f32 %v331, %v798
      %v845 = vadd.f32 %v332, %v803
      %v846 = vadd.f32 %v333, %v806
      %v847 = vadd.f32 %v334, %v811
      %v848 = vadd.f32 %v335, %v814
      %849 = vst [vmem:[#allocation2] sm:$0xff] %v817
      %850 = vst [vmem:[#allocation2 + $0x8] sm:$0xff] %v818
      %851 = vst [vmem:[#allocation2 + $0x10] sm:$0xff] %v819
      %852 = vst [vmem:[#allocation2 + $0x18] sm:$0xff] %v820
      %853 = vst [vmem:[#allocation2 + $0x20] sm:$0xff] %v821
      %854 = vst [vmem:[#allocation2 + $0x28] sm:$0xff] %v822
      %855 = vst [vmem:[#allocation2 + $0x30] sm:$0xff] %v823
      %856 = vst [vmem:[#allocation2 + $0x38] sm:$0xff] %v824
      %857 = vst [vmem:[#allocation2 + $0x40] sm:$0xff] %v825
      %858 = vst [vmem:[#allocation2 + $0x48] sm:$0xff] %v826
      %859 = vst [vmem:[#allocation2 + $0x50] sm:$0xff] %v827
      %860 = vst [vmem:[#allocation2 + $0x58] sm:$0xff] %v828
      %861 = vst [vmem:[#allocation2 + $0x60] sm:$0xff] %v829
      %862 = vst [vmem:[#allocation2 + $0x68] sm:$0xff] %v830
      %863 = vst [vmem:[#allocation2 + $0x70] sm:$0xff] %v831
      %864 = vst [vmem:[#allocation2 + $0x78] sm:$0xff] %v832
      %865 = vst [vmem:[#allocation2 + $0x80] sm:$0xff] %v833
      %866 = vst [vmem:[#allocation2 + $0x88] sm:$0xff] %v834
      %867 = vst [vmem:[#allocation2 + $0x90] sm:$0xff] %v835
      %868 = vst [vmem:[#allocation2 + $0x98] sm:$0xff] %v836
      %869 = vst [vmem:[#allocation2 + $0xa0] sm:$0xff] %v837
      %870 = vst [vmem:[#allocation2 + $0xa8] sm:$0xff] %v838
      %871 = vst [vmem:[#allocation2 + $0xb0] sm:$0xff] %v839
      %872 = vst [vmem:[#allocation2 + $0xb8] sm:$0xff] %v840
      %873 = vst [vmem:[#allocation2 + $0xc0] sm:$0xff] %v841
      %874 = vst [vmem:[#allocation2 + $0xc8] sm:$0xff] %v842
      %875 = vst [vmem:[#allocation2 + $0xd0] sm:$0xff] %v843
      %876 = vst [vmem:[#allocation2 + $0xd8] sm:$0xff] %v844
      %877 = vst [vmem:[#allocation2 + $0xe0] sm:$0xff] %v845
      %878 = vst [vmem:[#allocation2 + $0xe8] sm:$0xff] %v846
      %879 = vst [vmem:[#allocation2 + $0xf0] sm:$0xff] %v847
      %880 = vst [vmem:[#allocation2 + $0xf8] sm:$0xff] %v848
      // Predicated region
      $region37: #{matmul_bias_act.1} parent=31 // pred_check
        %p881 = pneg %p268
      $region38: #{matmul_bias_act.1} parent=31 // pred_check_branch
        %883 = sbr.rel (%p881) target = $region40
      $region39: #{matmul_bias_act.1} parent=31 // pred_region
        %v884 = vld [vmem:[#allocation2] sm:$0xff]
        %v885 = vld [vmem:[#allocation2 + $0x8] sm:$0xff]
        %v886 = vld [vmem:[#allocation2 + $0x10] sm:$0xff]
        %v887 = vld [vmem:[#allocation2 + $0x18] sm:$0xff]
        %v888 = vld [vmem:[#allocation2 + $0x20] sm:$0xff]
        %v889 = vld [vmem:[#allocation2 + $0x28] sm:$0xff]
        %v890 = vld [vmem:[#allocation2 + $0x30] sm:$0xff]
        %v891 = vld [vmem:[#allocation2 + $0x38] sm:$0xff]
        %v892 = vld [vmem:[#allocation2 + $0x40] sm:$0xff]
        %v893 = vld [vmem:[#allocation2 + $0x48] sm:$0xff]
        %v894 = vld [vmem:[#allocation2 + $0x50] sm:$0xff]
        %v895 = vld [vmem:[#allocation2 + $0x58] sm:$0xff]
        %v896 = vld [vmem:[#allocation2 + $0x60] sm:$0xff]
        %v897 = vld [vmem:[#allocation2 + $0x68] sm:$0xff]
        %v898 = vld [vmem:[#allocation2 + $0x70] sm:$0xff]
        %v899 = vld [vmem:[#allocation2 + $0x78] sm:$0xff]
        %v900 = vld [vmem:[#allocation2 + $0x80] sm:$0xff]
        %v901 = vld [vmem:[#allocation2 + $0x88] sm:$0xff]
        %v902 = vld [vmem:[#allocation2 + $0x90] sm:$0xff]
        %v903 = vld [vmem:[#allocation2 + $0x98] sm:$0xff]
        %v904 = vld [vmem:[#allocation2 + $0xa0] sm:$0xff]
        %v905 = vld [vmem:[#allocation2 + $0xa8] sm:$0xff]
        %v906 = vld [vmem:[#allocation2 + $0xb0] sm:$0xff]
        %v907 = vld [vmem:[#allocation2 + $0xb8] sm:$0xff]
        %v908 = vld [vmem:[#allocation2 + $0xc0] sm:$0xff]
        %v909 = vld [vmem:[#allocation2 + $0xc8] sm:$0xff]
        %v910 = vld [vmem:[#allocation2 + $0xd0] sm:$0xff]
        %v911 = vld [vmem:[#allocation2 + $0xd8] sm:$0xff]
        %v912 = vld [vmem:[#allocation2 + $0xe0] sm:$0xff]
        %v913 = vld [vmem:[#allocation2 + $0xe8] sm:$0xff]
        %v914 = vld [vmem:[#allocation2 + $0xf0] sm:$0xff]
        %v915 = vld [vmem:[#allocation2 + $0xf8] sm:$0xff]
        %v916 = vld [vmem:[%s257] sm:$0x1]
        %v918 = vlaneseq
        %v919 = vshrl.u32 %v918, 7
        %v920 = vsub.s32 0, %v919
        %v921 = vrot.slane %v916, %v920
        %v923 = vadd.f32 %v884, %v921
        %v924 = vadd.f32 %v885, %v921
        %v925 = vadd.f32 %v886, %v921
        %v926 = vadd.f32 %v887, %v921
        %v927 = vadd.f32 %v888, %v921
        %v928 = vadd.f32 %v889, %v921
        %v929 = vadd.f32 %v890, %v921
        %v930 = vadd.f32 %v891, %v921
        %v931 = vadd.f32 %v892, %v921
        %v932 = vadd.f32 %v893, %v921
        %v933 = vadd.f32 %v894, %v921
        %v934 = vadd.f32 %v895, %v921
        %v935 = vadd.f32 %v896, %v921
        %v936 = vadd.f32 %v897, %v921
        %v937 = vadd.f32 %v898, %v921
        %v938 = vadd.f32 %v899, %v921
        %v939 = vadd.f32 %v900, %v921
        %v940 = vadd.f32 %v901, %v921
        %v941 = vadd.f32 %v902, %v921
        %v942 = vadd.f32 %v903, %v921
        %v943 = vadd.f32 %v904, %v921
        %v944 = vadd.f32 %v905, %v921
        %v945 = vadd.f32 %v906, %v921
        %v946 = vadd.f32 %v907, %v921
        %v947 = vadd.f32 %v908, %v921
        %v948 = vadd.f32 %v909, %v921
        %v949 = vadd.f32 %v910, %v921
        %v950 = vadd.f32 %v911, %v921
        %v951 = vadd.f32 %v912, %v921
        %v952 = vadd.f32 %v913, %v921
        %v953 = vadd.f32 %v914, %v921
        %v954 = vadd.f32 %v915, %v921
        %v955 = vmax.f32 %v923, 0.0
        %v956 = vmax.f32 %v924, 0.0
        %v957 = vmax.f32 %v925, 0.0
        %v958 = vmax.f32 %v926, 0.0
        %v959 = vmax.f32 %v927, 0.0
        %v960 = vmax.f32 %v928, 0.0
        %v961 = vmax.f32 %v929, 0.0
        %v962 = vmax.f32 %v930, 0.0
        %v963 = vmax.f32 %v931, 0.0
        %v964 = vmax.f32 %v932, 0.0
        %v965 = vmax.f32 %v933, 0.0
        %v966 = vmax.f32 %v934, 0.0
        %v967 = vmax.f32 %v935, 0.0
        %v968 = vmax.f32 %v936, 0.0
        %v969 = vmax.f32 %v937, 0.0
        %v970 = vmax.f32 %v938, 0.0
        %v971 = vmax.f32 %v939, 0.0
        %v972 = vmax.f32 %v940, 0.0
        %v973 = vmax.f32 %v941, 0.0
        %v974 = vmax.f32 %v942, 0.0
        %v975 = vmax.f32 %v943, 0.0
        %v976 = vmax.f32 %v944, 0.0
        %v977 = vmax.f32 %v945, 0.0
        %v978 = vmax.f32 %v946, 0.0
        %v979 = vmax.f32 %v947, 0.0
        %v980 = vmax.f32 %v948, 0.0
        %v981 = vmax.f32 %v949, 0.0
        %v982 = vmax.f32 %v950, 0.0
        %v983 = vmax.f32 %v951, 0.0
        %v984 = vmax.f32 %v952, 0.0
        %v985 = vmax.f32 %v953, 0.0
        %v986 = vmax.f32 %v954, 0.0
        %987 = vst [vmem:[%s265] sm:$0xff] %v955
        %988 = vst [vmem:[%s265 + $0x8] sm:$0xff] %v956
        %989 = vst [vmem:[%s265 + $0x10] sm:$0xff] %v957
        %990 = vst [vmem:[%s265 + $0x18] sm:$0xff] %v958
        %991 = vst [vmem:[%s265 + $0x20] sm:$0xff] %v959
        %992 = vst [vmem:[%s265 + $0x28] sm:$0xff] %v960
        %993 = vst [vmem:[%s265 + $0x30] sm:$0xff] %v961
        %994 = vst [vmem:[%s265 + $0x38] sm:$0xff] %v962
        %995 = vst [vmem:[%s265 + $0x40] sm:$0xff] %v963
        %996 = vst [vmem:[%s265 + $0x48] sm:$0xff] %v964
        %997 = vst [vmem:[%s265 + $0x50] sm:$0xff] %v965
        %998 = vst [vmem:[%s265 + $0x58] sm:$0xff] %v966
        %999 = vst [vmem:[%s265 + $0x60] sm:$0xff] %v967
        %1000 = vst [vmem:[%s265 + $0x68] sm:$0xff] %v968
        %1001 = vst [vmem:[%s265 + $0x70] sm:$0xff] %v969
        %1002 = vst [vmem:[%s265 + $0x78] sm:$0xff] %v970
        %1003 = vst [vmem:[%s265 + $0x80] sm:$0xff] %v971
        %1004 = vst [vmem:[%s265 + $0x88] sm:$0xff] %v972
        %1005 = vst [vmem:[%s265 + $0x90] sm:$0xff] %v973
        %1006 = vst [vmem:[%s265 + $0x98] sm:$0xff] %v974
        %1007 = vst [vmem:[%s265 + $0xa0] sm:$0xff] %v975
        %1008 = vst [vmem:[%s265 + $0xa8] sm:$0xff] %v976
        %1009 = vst [vmem:[%s265 + $0xb0] sm:$0xff] %v977
        %1010 = vst [vmem:[%s265 + $0xb8] sm:$0xff] %v978
        %1011 = vst [vmem:[%s265 + $0xc0] sm:$0xff] %v979
        %1012 = vst [vmem:[%s265 + $0xc8] sm:$0xff] %v980
        %1013 = vst [vmem:[%s265 + $0xd0] sm:$0xff] %v981
        %1014 = vst [vmem:[%s265 + $0xd8] sm:$0xff] %v982
        %1015 = vst [vmem:[%s265 + $0xe0] sm:$0xff] %v983
        %1016 = vst [vmem:[%s265 + $0xe8] sm:$0xff] %v984
        %1017 = vst [vmem:[%s265 + $0xf0] sm:$0xff] %v985
        %1018 = vst [vmem:[%s265 + $0xf8] sm:$0xff] %v986
      $region40: #{matmul_bias_act.1} parent=31 // pred_fallthru
        _
      %s1019 = smul.u32 32, %s19
      %p1020 = scmp.lt.s32.totalorder %s1019, 575
      %s1021 = scalar_select %p1020, %s1019, 575
      %p1022 = scmp.lt.s32.totalorder %s20, 0
      %s1023 = scalar_select %p1022, %s20, 0
      %s1024 = sadd.s32 %s1023, %s1021
      %s1025 = smul.addr %s1024, 8
      %s1026 = scalar_lea.vmem %s3, %s1025
      // Predicated region
      $region41: #{matmul_bias_act.1} parent=31 // pred_check
        %p1027 = pneg %p135
      $region42: #{matmul_bias_act.1} parent=31 // pred_check_branch
        %1029 = sbr.rel (%p1027) target = $region44
      $region43: #{matmul_bias_act.1} parent=31 // pred_region
        %s1030 = smul.u32 32, %s19
      $region44: #{matmul_bias_act.1} parent=31 // pred_fallthru
        _
    $region32: #{matmul_bias_act.1} parent=5 // pred_fallthru
      _
    %p1031 = scmp.le.s32.totalorder 2, %s9
    // Predicated region
    $region45: #{matmul_bias_act.1} parent=5 // pred_check
      %p1032 = pneg %p1031
    $region46: #{matmul_bias_act.1} parent=5 // pred_check_branch
      %1034 = sbr.rel (%p1032) target = $region48
    $region47: #{matmul_bias_act.1} parent=5 // pred_region
      %s1035 = ssub.s32 %s9, 2
      // Predicated region
      $region49: #{matmul_bias_act.1} parent=47 // pred_check
        %p1036 = pneg %p141
      $region50: #{matmul_bias_act.1} parent=47 // pred_check_branch
        %1038 = sbr.rel (%p1036) target = $region52
      $region51: #{matmul_bias_act.1} parent=47 // pred_region
        %s1039 = smul.u32 32, %s22
        %p1040 = scmp.lt.s32.totalorder %s1039, 575
        %s1041 = scalar_select %p1040, %s1039, 575
        %p1042 = scmp.lt.s32.totalorder %s23, 0
        %s1043 = scalar_select %p1042, %s23, 0
        %s1044 = sadd.s32 %s1043, %s1041
        %s1045 = smul.addr %s1044, 8
        %s1046 = scalar_lea.vmem %s3, %s1045
      $region52: #{matmul_bias_act.1} parent=47 // pred_fallthru
        _
    $region48: #{matmul_bias_act.1} parent=5 // pred_fallthru
      _
  $region6: #{matmul_bias_act.1} parent=0 // loop_footer
    %s13 = sadd.s32 1, %s9
  $region7: #{matmul_bias_act.1} parent=0 // loop_footer_branch
    %8 = sbr.rel target = $region3
  $region8: #{matmul_bias_act.1} parent=0 // loop_exit
    _

</llo_original>
